<compile_context>
chip_gen: v7x
topology: tpu7x:2x2x1
jax: 0.10.0
libtpu: 0.0.40
codegen_flags: <defaults>
</compile_context>

<pallas_src>
import math

import jax
import jax.numpy as jnp
from jax.experimental import pallas as pl
from jax.experimental.pallas import tpu as pltpu

NUM_HEADS = 8
LN_EPS = 1e-5


def attention_fusion_kernel(
    lstm_ref, tq_ref,        # activations: (tb, L), (tb, D)
    wf_ref, bf_ref,          # fused weight (L, D) and bias (1, D)
    gamma_ref, beta_ref,     # LayerNorm affine, (1, D) each
    out_ref,                 # (tb, D)
):
    lstm = lstm_ref[...]                             # (tb, L)
    tq = tq_ref[...]                                 # (tb, D)

    # Single fused matmul replaces lstm_projection + v-proj + out_proj.
    # (Softmax over 1 key == 1.0 exactly, so attention output == V exactly.)
    attended = jnp.dot(lstm, wf_ref[...],
                       preferred_element_type=jnp.float32) + bf_ref[...]

    # TODO(synk): nn.Dropout is identity in eval mode; inference semantics used.
    x = tq + attended                                # (tb, D) residual

    # Single-pass LayerNorm over the feature axis: sum and sum-of-squares
    # reductions are independent (no mean -> recenter -> reduce dependency).
    D = x.shape[-1]
    inv_d = 1.0 / D
    s1 = jnp.sum(x, axis=-1, keepdims=True)
    s2 = jnp.sum(x * x, axis=-1, keepdims=True)
    mean = s1 * inv_d
    var = s2 * inv_d - mean * mean
    inv_std = jax.lax.rsqrt(var + LN_EPS)
    out_ref[...] = (x - mean) * inv_std * gamma_ref[...] + beta_ref[...]


def attention_fusion(lstm_features, transformer_features, params, *, tb=None):
    """Pallas forward of AttentionFusion (eval mode).

    params follow the torch layout: wl (D, L), wq/wk/wv/wo (D, D), biases (D,),
    gamma/beta (D,).  q/k params are accepted but unused (dead with seq len 1).
    """
    B, L = lstm_features.shape
    D = transformer_features.shape[1]

    # Batch tile: large enough to amortize per-step overhead and fill the MXU
    # M axis, capped by the batch size.  (Per-row VMEM cost is tiny at D=64,
    # so tb up to a few thousand rows is safe on all generations.)
    if tb is None:
        tb = min(B, 1024)
    assert B % tb == 0, (B, tb)

    # ---- wrapper-time weight folding (exact up to f32 reassociation) ----
    # attended = out_proj(v) = out_proj(v_proj(lstm_proj(lstm)))
    wl_t = params["wl"].T                                   # (L, D)
    wv_t = params["wv"].T                                   # (D, D)
    wo_t = params["wo"].T                                   # (D, D)
    w_fused = wl_t @ wv_t @ wo_t                            # (L, D)
    b_fused = (params["bl"] @ wv_t @ wo_t
               + params["bv"] @ wo_t
               + params["bo"])                              # (D,)
    # NOTE: for bandwidth-bound large-batch runs on v6e/v7x, w_fused and the
    # activation streams can be cast to bf16 (keep preferred_element_type=f32);
    # kept in f32 here to match the reference to tight tolerance.

    row = lambda v: v.reshape(1, -1).astype(jnp.float32)
    args = (
        lstm_features.astype(jnp.float32),
        transformer_features.astype(jnp.float32),
        w_fused.astype(jnp.float32), row(b_fused),
        row(params["gamma"]), row(params["beta"]),
    )

    batched_L = pl.BlockSpec((tb, L), lambda i: (i, 0))
    batched_D = pl.BlockSpec((tb, D), lambda i: (i, 0))
    full = lambda a: pl.BlockSpec(a.shape, lambda i: (0,) * a.ndim)
    in_specs = [batched_L, batched_D] + [full(a) for a in args[2:]]

    return pl.pallas_call(
        attention_fusion_kernel,
        out_shape=jax.ShapeDtypeStruct((B, D), jnp.float32),
        grid=(B // tb,),
        in_specs=in_specs,
        out_specs=pl.BlockSpec((tb, D), lambda i: (i, 0)),
        compiler_params=pltpu.CompilerParams(dimension_semantics=("parallel",)),
    )(*args)


def reference(lstm, tq, p):
    """Pure-JAX reference mirroring torch semantics (eval mode), full MHA path."""
    lstm_proj = lstm @ p["wl"].T + p["bl"]
    q = tq @ p["wq"].T + p["bq"]
    k = lstm_proj @ p["wk"].T + p["bk"]
    v = lstm_proj @ p["wv"].T + p["bv"]
    B, D = q.shape
    hd = D // NUM_HEADS
    qh = q.reshape(B, NUM_HEADS, 1, hd)
    kh = k.reshape(B, NUM_HEADS, 1, hd)
    vh = v.reshape(B, NUM_HEADS, 1, hd)
    s = jnp.einsum("bhqd,bhkd->bhqk", qh, kh) / math.sqrt(hd)
    a = jax.nn.softmax(s, axis=-1)
    o = jnp.einsum("bhqk,bhkd->bhqd", a, vh).reshape(B, D)
    attended = o @ p["wo"].T + p["bo"]
    x = tq + attended
    mean = x.mean(-1, keepdims=True)
    var = ((x - mean) ** 2).mean(-1, keepdims=True)
    return (x - mean) / jnp.sqrt(var + LN_EPS) * p["gamma"] + p["beta"]


if __name__ == "__main__":
    B, L, D = 8, 32, 64   # batch, lstm_dim, transformer_dim (8 heads -> head_dim 8)

    key = jax.random.PRNGKey(0)
    keys = jax.random.split(key, 12)
    w = lambda k, shape: (0.02 * jax.random.normal(k, shape, jnp.float32))

    # Deterministic synthetic parameters (shapes match the nn.Module __init__).
    params = {
        "wl": w(keys[0], (D, L)), "bl": w(keys[1], (D,)),      # lstm_projection
        "wq": w(keys[2], (D, D)), "bq": w(keys[3], (D,)),      # in_proj (Q slice)
        "wk": w(keys[4], (D, D)), "bk": w(keys[5], (D,)),      # in_proj (K slice)
        "wv": w(keys[6], (D, D)), "bv": w(keys[7], (D,)),      # in_proj (V slice)
        "wo": w(keys[8], (D, D)), "bo": w(keys[9], (D,)),      # out_proj
        "gamma": jnp.ones((D,), jnp.float32),                  # LayerNorm weight
        "beta": jnp.zeros((D,), jnp.float32),                  # LayerNorm bias
    }

    lstm_features = jax.random.normal(keys[10], (B, L), jnp.float32)
    transformer_features = jax.random.normal(keys[11], (B, D), jnp.float32)

    out = attention_fusion(lstm_features, transformer_features, params)
    out = jax.block_until_ready(out)

    ref = reference(lstm_features, transformer_features, params)
    assert out.shape == (B, D)
    assert jnp.allclose(out, ref, atol=1e-5, rtol=1e-5), float(jnp.max(jnp.abs(out - ref)))

    print("KERNEL_OK")
</pallas_src>

<mosaic_0001>
module attributes {stable_mosaic.version = 11 : i64} {
  func.func @attention_fusion_kernel(%arg0: i32, %arg1: memref<8x32xf32, #tpu.memory_space<vmem>>, %arg2: memref<8x64xf32, #tpu.memory_space<vmem>>, %arg3: memref<32x64xf32, #tpu.memory_space<vmem>>, %arg4: memref<1x64xf32, #tpu.memory_space<vmem>>, %arg5: memref<1x64xf32, #tpu.memory_space<vmem>>, %arg6: memref<1x64xf32, #tpu.memory_space<vmem>>, %arg7: memref<8x64xf32, #tpu.memory_space<vmem>>) attributes {dimension_semantics = [#tpu.dimension_semantics<parallel>], iteration_bounds = array<i64: 1>, scalar_prefetch = 0 : i64, scratch_operands = 0 : i64, tpu.core_type = #tpu.core_type<tc>, window_params = [{transform_indices = @transform_0, window_bounds = array<i64: 8, 32>}, {transform_indices = @transform_1, window_bounds = array<i64: 8, 64>}, {pipeline_mode = #tpu.pipeline_mode<synchronous>, transform_indices = @transform_2, window_bounds = array<i64: 32, 64>}, {pipeline_mode = #tpu.pipeline_mode<synchronous>, transform_indices = @transform_3, window_bounds = array<i64: 1, 64>}, {pipeline_mode = #tpu.pipeline_mode<synchronous>, transform_indices = @transform_4, window_bounds = array<i64: 1, 64>}, {pipeline_mode = #tpu.pipeline_mode<synchronous>, transform_indices = @transform_5, window_bounds = array<i64: 1, 64>}, {transform_indices = @transform_6, window_bounds = array<i64: 8, 64>}]} {
    %c0 = arith.constant 0 : index
    %c0_0 = arith.constant 0 : index
    %0 = vector.load %arg1[%c0, %c0_0] : memref<8x32xf32, #tpu.memory_space<vmem>>, vector<8x32xf32>
    %c0_1 = arith.constant 0 : index
    %c0_2 = arith.constant 0 : index
    %1 = vector.load %arg2[%c0_1, %c0_2] : memref<8x64xf32, #tpu.memory_space<vmem>>, vector<8x64xf32>
    %c0_3 = arith.constant 0 : index
    %c0_4 = arith.constant 0 : index
    %2 = vector.load %arg3[%c0_3, %c0_4] : memref<32x64xf32, #tpu.memory_space<vmem>>, vector<32x64xf32>
    %cst = arith.constant dense<0.000000e+00> : vector<8x64xf32>
    %3 = tpu.matmul %0, %2, %cst {dimension_numbers = #tpu.dot_dimension_numbers<[1], [0], [0], [1], [0, 0, 1, 1], [], []>} : vector<8x32xf32>, vector<32x64xf32>, vector<8x64xf32> -> vector<8x64xf32>
    %c0_5 = arith.constant 0 : index
    %c0_6 = arith.constant 0 : index
    %4 = vector.load %arg4[%c0_5, %c0_6] : memref<1x64xf32, #tpu.memory_space<vmem>>, vector<1x64xf32>
    %5 = vector.broadcast %4 : vector<1x64xf32> to vector<8x64xf32>
    %6 = arith.addf %3, %5 : vector<8x64xf32>
    %7 = arith.addf %1, %6 : vector<8x64xf32>
    %cst_7 = arith.constant dense<0.000000e+00> : vector<8xf32>
    %8 = vector.multi_reduction <add>, %7, %cst_7 [1] : vector<8x64xf32> to vector<8xf32>
    %9 = vector.shape_cast %8 : vector<8xf32> to vector<8x1xf32>
    %10 = arith.mulf %7, %7 : vector<8x64xf32>
    %cst_8 = arith.constant dense<0.000000e+00> : vector<8xf32>
    %11 = vector.multi_reduction <add>, %10, %cst_8 [1] : vector<8x64xf32> to vector<8xf32>
    %12 = vector.shape_cast %11 : vector<8xf32> to vector<8x1xf32>
    %cst_9 = arith.constant 1.562500e-02 : f32
    %13 = vector.broadcast %cst_9 : f32 to vector<8x1xf32>
    %14 = arith.mulf %9, %13 : vector<8x1xf32>
    %cst_10 = arith.constant 1.562500e-02 : f32
    %15 = vector.broadcast %cst_10 : f32 to vector<8x1xf32>
    %16 = arith.mulf %12, %15 : vector<8x1xf32>
    %17 = arith.mulf %14, %14 : vector<8x1xf32>
    %18 = arith.subf %16, %17 : vector<8x1xf32>
    %cst_11 = arith.constant 9.99999974E-6 : f32
    %19 = vector.broadcast %cst_11 : f32 to vector<8x1xf32>
    %20 = arith.addf %18, %19 : vector<8x1xf32>
    %21 = math.rsqrt %20 : vector<8x1xf32>
    %22 = vector.broadcast %14 : vector<8x1xf32> to vector<8x64xf32>
    %23 = arith.subf %7, %22 : vector<8x64xf32>
    %24 = vector.broadcast %21 : vector<8x1xf32> to vector<8x64xf32>
    %25 = arith.mulf %23, %24 : vector<8x64xf32>
    %c0_12 = arith.constant 0 : index
    %c0_13 = arith.constant 0 : index
    %26 = vector.load %arg5[%c0_12, %c0_13] : memref<1x64xf32, #tpu.memory_space<vmem>>, vector<1x64xf32>
    %27 = vector.broadcast %26 : vector<1x64xf32> to vector<8x64xf32>
    %28 = arith.mulf %25, %27 : vector<8x64xf32>
    %c0_14 = arith.constant 0 : index
    %c0_15 = arith.constant 0 : index
    %29 = vector.load %arg6[%c0_14, %c0_15] : memref<1x64xf32, #tpu.memory_space<vmem>>, vector<1x64xf32>
    %30 = vector.broadcast %29 : vector<1x64xf32> to vector<8x64xf32>
    %31 = arith.addf %28, %30 : vector<8x64xf32>
    %c0_16 = arith.constant 0 : index
    %c0_17 = arith.constant 0 : index
    %32 = vector.load %arg7[%c0_16, %c0_17] : memref<8x64xf32, #tpu.memory_space<vmem>>, vector<8x64xf32>
    tpu.vector_store %arg7[%c0_16, %c0_17], %31 {strides = array<i32>} : memref<8x64xf32, #tpu.memory_space<vmem>>, vector<8x64xf32>,
    return
  }
  func.func @transform_0(%arg0: i32) -> (i32, i32) {
    %c0_i32 = arith.constant 0 : i32
    %c0_i32_0 = arith.constant 0 : i32
    return %arg0, %c0_i32 : i32, i32
  }
  func.func @transform_1(%arg0: i32) -> (i32, i32) {
    %c0_i32 = arith.constant 0 : i32
    %c0_i32_0 = arith.constant 0 : i32
    return %arg0, %c0_i32 : i32, i32
  }
  func.func @transform_2(%arg0: i32) -> (i32, i32) {
    %c0_i32 = arith.constant 0 : i32
    %c0_i32_0 = arith.constant 0 : i32
    %c0_i32_1 = arith.constant 0 : i32
    return %c0_i32, %c0_i32_0 : i32, i32
  }
  func.func @transform_3(%arg0: i32) -> (i32, i32) {
    %c0_i32 = arith.constant 0 : i32
    %c0_i32_0 = arith.constant 0 : i32
    %c0_i32_1 = arith.constant 0 : i32
    return %c0_i32, %c0_i32_0 : i32, i32
  }
  func.func @transform_4(%arg0: i32) -> (i32, i32) {
    %c0_i32 = arith.constant 0 : i32
    %c0_i32_0 = arith.constant 0 : i32
    %c0_i32_1 = arith.constant 0 : i32
    return %c0_i32, %c0_i32_0 : i32, i32
  }
  func.func @transform_5(%arg0: i32) -> (i32, i32) {
    %c0_i32 = arith.constant 0 : i32
    %c0_i32_0 = arith.constant 0 : i32
    %c0_i32_1 = arith.constant 0 : i32
    return %c0_i32, %c0_i32_0 : i32, i32
  }
  func.func @transform_6(%arg0: i32) -> (i32, i32) {
    %c0_i32 = arith.constant 0 : i32
    %c0_i32_0 = arith.constant 0 : i32
    return %arg0, %c0_i32 : i32, i32
  }
}

</mosaic_0001>

<llo_original>
// kernel: tpu_custom_call.1
$region0: #{tpu_custom_call.1}
  #allocation0 [shape = 'u32[]', space=smem, size = 0x4, offset = 0x4, fixed_abs, tag = 'smem constant byte address 0x4 - core index']
  #allocation1 [shape = 'u32[144,128]{1,0:T(1,128)}', space=vmem, size = 0x12000, scoped, tag = 'internal scratch']
  %s0 = inlined_call_operand.hbm [shape: f32[8,32], index: 0, kind: input, shape index: {}]
  %s1 = inlined_call_operand.hbm [shape: f32[8,64], index: 1, kind: input, shape index: {}]
  %s2 = inlined_call_operand.hbm [shape: f32[32,64], index: 2, kind: input, shape index: {}]
  %s3 = inlined_call_operand.vmem [shape: f32[1,64], index: 3, kind: input, shape index: {}]
  %s4 = inlined_call_operand.vmem [shape: f32[1,64], index: 4, kind: input, shape index: {}]
  %s5 = inlined_call_operand.vmem [shape: f32[1,64], index: 5, kind: input, shape index: {}]
  %s6 = inlined_call_operand.hbm [shape: f32[8,64], index: 6, kind: output, shape index: {}]
  %s7 = sld [smem:[#allocation0]]
  $region46: #{tpu_custom_call.1} parent=0
    _
  %s9 = ssub.s32 1, %s7
  %s10 = scalar_select 0, %s9, %s7
  $region1: #{tpu_custom_call.1} parent=0
    #allocation2 [shape = 'u8[4096]{0}', space=vmem, size = 0x1000, scoped, tag = 'input window, operand 0, single buffered']
    #allocation3 [shape = 's32[1]{0}', space=sflag, size = 0x4, scoped, tag = 'scoped memory for tpu_custom_call.1']
    #allocation4 [shape = 's32[1]{0}', space=sflag, size = 0x4, scoped, tag = 'scoped memory for tpu_custom_call.1']
    #allocation5 [shape = 'u8[4096]{0}', space=vmem, size = 0x1000, scoped, tag = 'input window, operand 1, single buffered']
    #allocation6 [shape = 's32[1]{0}', space=sflag, size = 0x4, scoped, tag = 'scoped memory for tpu_custom_call.1']
    #allocation7 [shape = 'u8[16384]{0}', space=vmem, size = 0x4000, scoped, tag = 'input window, operand 2, single buffered']
    #allocation8 [shape = 'u8[4096]{0}', space=vmem, size = 0x1000, scoped, tag = 'output window, operand 0, single buffered']
    %11 = vsyncpa [#allocation3], 0
    %12 = vsyncpa [#allocation6], 0
    %13 = vsyncpa [#allocation4], 0
    // Predicated region
    $region2: #{tpu_custom_call.1} parent=1 // pred_check
      _
    $region3: #{tpu_custom_call.1} parent=1 // pred_check_branch
      %15 = sbr.rel (0) target = $region5
    $region4: #{tpu_custom_call.1} parent=1 // pred_region
      %s17 = ssub.s32 128, 128
      %18 = vsyncadd [#allocation3], %s17
      %s20 = sshll.u32 [#allocation2], 4
      %s21 = int_to_ptr.vmem [resolvable:$true] %s20
      %23 = dma.hbm_to_vmem [thread:$0]  %s0, 128, %s21, [#allocation3]
    $region5: #{tpu_custom_call.1} parent=1 // pred_fallthru
      _
    // Predicated region
    $region6: #{tpu_custom_call.1} parent=1 // pred_check
      _
    $region7: #{tpu_custom_call.1} parent=1 // pred_check_branch
      %25 = sbr.rel (0) target = $region9
    $region8: #{tpu_custom_call.1} parent=1 // pred_region
      %s27 = ssub.s32 128, 128
      %28 = vsyncadd [#allocation6], %s27
      %s30 = sshll.u32 [#allocation5], 4
      %s31 = int_to_ptr.vmem [resolvable:$true] %s30
      %33 = dma.hbm_to_vmem [thread:$0]  %s1, 128, %s31, [#allocation6]
    $region9: #{tpu_custom_call.1} parent=1 // pred_fallthru
      _
    // Predicated region
    $region10: #{tpu_custom_call.1} parent=1 // pred_check
      _
    $region11: #{tpu_custom_call.1} parent=1 // pred_check_branch
      %35 = sbr.rel (0) target = $region13
    $region12: #{tpu_custom_call.1} parent=1 // pred_region
      %s37 = ssub.s32 512, 512
      %38 = vsyncadd [#allocation6], %s37
      %s39 = sshll.u32 [#allocation7], 4
      %s40 = int_to_ptr.vmem [resolvable:$true] %s39
      %45 = dma.hbm_to_vmem [thread:$0]  %s2, 512, %s40, [#allocation6], 128, 128, 8
    $region13: #{tpu_custom_call.1} parent=1 // pred_fallthru
      _
    // Predicated region
    $region14: #{tpu_custom_call.1} parent=1 // pred_check
      _
    $region15: #{tpu_custom_call.1} parent=1 // pred_check_branch
      %47 = sbr.rel (0) target = $region17
    $region16: #{tpu_custom_call.1} parent=1 // pred_region
      _
    $region17: #{tpu_custom_call.1} parent=1 // pred_fallthru
      _
    // Predicated region
    $region18: #{tpu_custom_call.1} parent=1 // pred_check
      _
    $region19: #{tpu_custom_call.1} parent=1 // pred_check_branch
      %49 = sbr.rel (0) target = $region21
    $region20: #{tpu_custom_call.1} parent=1 // pred_region
      _
    $region21: #{tpu_custom_call.1} parent=1 // pred_fallthru
      _
    // Predicated region
    $region22: #{tpu_custom_call.1} parent=1 // pred_check
      _
    $region23: #{tpu_custom_call.1} parent=1 // pred_check_branch
      %51 = sbr.rel (0) target = $region25
    $region24: #{tpu_custom_call.1} parent=1 // pred_region
      _
    $region25: #{tpu_custom_call.1} parent=1 // pred_fallthru
      _
    // Predicated region
    $region26: #{tpu_custom_call.1} parent=1 // pred_check
      _
    $region27: #{tpu_custom_call.1} parent=1 // pred_check_branch
      %53 = sbr.rel (0) target = $region29
    $region28: #{tpu_custom_call.1} parent=1 // pred_region
      %54 = dma.done [#allocation3], 128
    $region29: #{tpu_custom_call.1} parent=1 // pred_fallthru
      _
    // Predicated region
    $region30: #{tpu_custom_call.1} parent=1 // pred_check
      _
    $region31: #{tpu_custom_call.1} parent=1 // pred_check_branch
      %56 = sbr.rel (0) target = $region33
    $region32: #{tpu_custom_call.1} parent=1 // pred_region
      %57 = dma.done [#allocation6], 128
    $region33: #{tpu_custom_call.1} parent=1 // pred_fallthru
      _
    // Predicated region
    $region34: #{tpu_custom_call.1} parent=1 // pred_check
      _
    $region35: #{tpu_custom_call.1} parent=1 // pred_check_branch
      %59 = sbr.rel (0) target = $region37
    $region36: #{tpu_custom_call.1} parent=1 // pred_region
      %60 = dma.done [#allocation6], 512
    $region37: #{tpu_custom_call.1} parent=1 // pred_fallthru
      _
    %v61 = vld [vmem:[#allocation2] sm:$0xff]
    %v62 = vld [vmem:[#allocation5] sm:$0xff]
    %v63 = vld [vmem:[#allocation7] sm:$0xff]
    %v64 = vld [vmem:[#allocation7 + $0x8] sm:$0xff]
    %v65 = vld [vmem:[#allocation7 + $0x10] sm:$0xff]
    %v66 = vld [vmem:[#allocation7 + $0x18] sm:$0xff]
    %v67 = vld [vmem:[%s3] sm:$0x1]
    %v69 = vlaneseq
    %v70 = vshrl.u32 %v69, 7
    %v71 = vsub.s32 0, %v70
    %v72 = vrot.slane %v67, %v71
    %vm74 = vcmask 261120
    %v76 = vsel %vm74, %v61, 0
    %78 = vmatprep.subr.mxu0 0.0
    %79 = vmatpush1.msra.mxu0 %v63
    %80 = vmatprep.subr.mxu0 0.0
    %81 = vmatpush1.msra.mxu0 %v64
    %82 = vmatprep.subr.mxu0 0.0
    %83 = vmatpush1.msra.mxu0 %v65
    %84 = vmatprep.subr.mxu0 0.0
    %85 = vmatpush1.msra.mxu0 %v66
    %86 = vmatprep.subr.mxu0 0.0
    %87 = vmatpush1.msra.mxu0 0.0
    %88 = vmatprep.subr.mxu0 0.0
    %89 = vmatpush1.msra.mxu0 0.0
    %90 = vmatprep.subr.mxu0 0.0
    %91 = vmatpush1.msra.mxu0 0.0
    %92 = vmatprep.subr.mxu0 0.0
    %93 = vmatpush1.msra.mxu0 0.0
    %94 = vmatprep.subr.mxu0 0.0
    %95 = vmatpush1.msra.mxu0 0.0
    %96 = vmatprep.subr.mxu0 0.0
    %97 = vmatpush1.msra.mxu0 0.0
    %98 = vmatprep.subr.mxu0 0.0
    %99 = vmatpush1.msra.mxu0 0.0
    %100 = vmatprep.subr.mxu0 0.0
    %101 = vmatpush1.msra.mxu0 0.0
    %102 = vmatprep.subr.mxu0 0.0
    %103 = vmatpush1.msra.mxu0 0.0
    %104 = vmatprep.subr.mxu0 0.0
    %105 = vmatpush1.msra.mxu0 0.0
    %106 = vmatprep.subr.mxu0 0.0
    %107 = vmatpush1.msra.mxu0 0.0
    %108 = vmatprep.subr.mxu0 0.0
    %109 = vmatpush1.msra.mxu0 0.0
    %110 = vmatprep.subr.mxu0 0.0
    %111 = vmatpush1.msra.mxu0 0.0
    %112 = vmatprep.subr.mxu0 0.0
    %113 = vmatpush1.msra.mxu0 0.0
    %114 = vmatprep.subr.mxu0 0.0
    %115 = vmatpush1.msra.mxu0 0.0
    %116 = vmatprep.subr.mxu0 0.0
    %117 = vmatpush1.msra.mxu0 0.0
    %118 = vmatprep.subr.mxu0 0.0
    %119 = vmatpush1.msra.mxu0 0.0
    %120 = vmatprep.subr.mxu0 0.0
    %121 = vmatpush1.msra.mxu0 0.0
    %122 = vmatprep.subr.mxu0 0.0
    %123 = vmatpush1.msra.mxu0 0.0
    %124 = vmatprep.subr.mxu0 0.0
    %125 = vmatpush1.msra.mxu0 0.0
    %126 = vmatprep.subr.mxu0 0.0
    %127 = vmatpush1.msra.mxu0 0.0
    %128 = vmatprep.subr.mxu0 0.0
    %129 = vmatpush1.msra.mxu0 0.0
    %130 = vmatprep.subr.mxu0 0.0
    %131 = vmatpush1.msra.mxu0 0.0
    %132 = vmatprep.subr.mxu0 0.0
    %133 = vmatpush1.msra.mxu0 0.0
    %134 = vmatprep.subr.mxu0 0.0
    %135 = vmatpush1.msra.mxu0 0.0
    %136 = vmatprep.subr.mxu0 0.0
    %137 = vmatpush1.msra.mxu0 0.0
    %138 = vmatprep.subr.mxu0 0.0
    %139 = vmatpush1.msra.mxu0 0.0
    %140 = vmatprep.subr.mxu0 0.0
    %141 = vmatpush1.msra.mxu0 0.0
    %142 = vmatprep.mubr.f32.mxu0 0.0
    %143 = vmatmul.mubr.f32.gmra.mrb[0].mxu0 %v76
    %v144 = vpop.f32.mrb[0].mxu0
    %v145 = vadd.f32 %v72, %v144
    %v146 = vpop.f32.mrb[0].mxu0
    %147 = vdwg.mxu0
    %v148 = vadd.f32 %v62, %v145
    %vm149 = vcmask 523264
    %v150 = vsel %vm149, %v148, 0.0
    %151 = vadd.xlane.f32.xlu0 %v150
    %v152 = vpop.xlane.xlu0 %151
    %v153 = vmul.f32 %v148, %v148
    %v154 = vsel %vm149, %v153, 0.0
    %155 = vadd.xlane.f32.xlu0 %v154
    %v156 = vpop.xlane.xlu0 %155
    %v157 = vmul.f32 %v152, 0.015625
    %v158 = vmul.f32 %v156, 0.015625
    %v159 = vmul.f32 %v157, %v157
    %v160 = vsub.f32 %v158, %v159
    %v161 = vadd.f32 %v160, 1e-05
    %v162 = vrsqrt.pop %v161
    %v163 = vsub.f32 %v148, %v157
    %v164 = vmul.f32 %v163, %v162
    %v165 = vld [vmem:[%s4] sm:$0x1]
    %v167 = vlaneseq
    %v168 = vshrl.u32 %v167, 7
    %v169 = vsub.s32 0, %v168
    %v170 = vrot.slane %v165, %v169
    %v172 = vmul.f32 %v164, %v170
    %v173 = vld [vmem:[%s5] sm:$0x1]
    %v175 = vlaneseq
    %v176 = vshrl.u32 %v175, 7
    %v177 = vsub.s32 0, %v176
    %v178 = vrot.slane %v173, %v177
    %v180 = vadd.f32 %v172, %v178
    %181 = vst.msk [vmem:[#allocation8] sm:$0xff] %vm149, %v180
    // Predicated region
    $region38: #{tpu_custom_call.1} parent=1 // pred_check
      _
    $region39: #{tpu_custom_call.1} parent=1 // pred_check_branch
      %183 = sbr.rel (0) target = $region41
    $region40: #{tpu_custom_call.1} parent=1 // pred_region
      %s185 = ssub.s32 128, 128
      %186 = vsyncadd [#allocation4], %s185
      %s188 = sshll.u32 [#allocation8], 4
      %s189 = int_to_ptr.vmem [resolvable:$true] %s188
      %191 = dma.vmem_to_hbm [thread:$0]  %s189, 128, %s6, [#allocation4]
    $region41: #{tpu_custom_call.1} parent=1 // pred_fallthru
      _
    // Predicated region
    $region42: #{tpu_custom_call.1} parent=1 // pred_check
      _
    $region43: #{tpu_custom_call.1} parent=1 // pred_check_branch
      %193 = sbr.rel (0) target = $region45
    $region44: #{tpu_custom_call.1} parent=1 // pred_region
      %194 = dma.done [#allocation4], 128
    $region45: #{tpu_custom_call.1} parent=1 // pred_fallthru
      _
    %195 = vsyncpa [#allocation3], 1
    %196 = vsyncpa [#allocation6], 1
    %197 = vsyncpa [#allocation4], 1

</llo_original>
